<compile_context>
chip_gen: v7x
topology: tpu7x:2x2x1
jax: 0.10.0
libtpu: 0.0.40
codegen_flags: <defaults>
</compile_context>

<pallas_src>
import functools

import numpy as np
import jax
import jax.numpy as jnp
from jax.experimental import pallas as pl
from jax.experimental.pallas import tpu as pltpu

_LANE = 128
_SUBLANE = 8


def _round_up(x, m):
    return ((x + m - 1) // m) * m


def _cdiv(a, b):
    return (a + b - 1) // b


@functools.lru_cache(maxsize=1)
def _bf16_exp_supported():
    """bf16 EUP exists on v6e/v7x; v2-v5 must do the exp in f32."""
    try:
        kind = jax.devices()[0].device_kind.lower()
    except Exception:
        return False
    if "tpu" not in kind:
        return False
    return not any(v in kind for v in ("v2", "v3", "v4", "v5"))


def _plan_tiles(N, C, D, Dp):
    """Pick the token-tile size TN and a matching scoped-VMEM limit."""
    # Per-token-row VMEM bytes:
    #   2x double-buffered f32 logits tile : 8*C
    #   2x double-buffered f32 output tile : 8*D
    #   internal temporaries (f32 logits/x copies, bf16 e, f32 prod, f32 out)
    per_row = 8 * C + 8 * D + (10 * C + 4 * Dp + 4 * D)
    fixed = 2 * C * Dp * 2            # double-buffered resident bf16 sembs
    budget = 28 * 1024 * 1024         # counted-buffer budget; headroom added below
    tn = max(_SUBLANE, (budget - fixed) // per_row)

    # Target a few MiB of HBM traffic per grid step so the ~0.35us per-step
    # pipeline overhead is well amortized.
    per_row_io = 4 * C + 4 * D
    tn = min(tn, max(_SUBLANE, (3 * 1024 * 1024) // per_row_io))
    tn = min(tn, 4096)
    tn = min(tn, _round_up(N, _SUBLANE))      # don't over-tile tiny problems

    # Keep >= 2 (ideally more) grid steps for dual-TensorCore chips (v7x) /
    # megacore, as long as each step still moves >= ~0.5 MiB.
    min_rows = max(_SUBLANE, (512 * 1024) // per_row_io)
    for steps in (8, 4, 2):
        cap = _round_up(_cdiv(N, steps), _SUBLANE)
        if cap >= min_rows:
            tn = min(tn, cap)
            break

    tn = max(_SUBLANE, (tn // _SUBLANE) * _SUBLANE)

    footprint = fixed + tn * per_row
    vmem_limit = int(min(max(footprint + 8 * 1024 * 1024, 16 * 1024 * 1024),
                         48 * 1024 * 1024))
    return tn, vmem_limit


def _v2s_kernel(logits_ref, sembs_ref, out_ref, *, denom_col, out_d, bf16_exp):
    # Stable softmax numerator; max reduction goes to the XLU.
    logits = logits_ref[...].astype(jnp.float32)
    m = jnp.max(logits, axis=-1, keepdims=True)
    x = logits - m
    if bf16_exp:
        e = jnp.exp(x.astype(jnp.bfloat16))          # bf16 EUP (v6e/v7x)
    else:
        e = jnp.exp(x).astype(jnp.bfloat16)          # f32 EUP + cast (v5e)
    # One MXU matmul yields [unnormalized_embs | softmax_denominator | 0-pad].
    prod = jnp.dot(e, sembs_ref[...], preferred_element_type=jnp.float32)
    denom = prod[:, denom_col:denom_col + 1]
    inv = pl.reciprocal(denom, approx=True)          # EUP slot, ~free
    out_ref[...] = prod[:, :out_d] * inv


def _softmax_matmul(logits_raw, compact_sembs):
    """Returns softmax(logits_raw, -1) @ compact_sembs, shape [N, D], f32."""
    N, C = logits_raw.shape
    C2, D = compact_sembs.shape
    assert C == C2

    # Augment sembs with a ones column (softmax denominator) + zero lane pad so
    # the matmul intermediate is lane-aligned (Dp multiple of 128).
    Dp = _round_up(D + 1, _LANE)
    ones_col = jnp.ones((C, 1), dtype=jnp.float32)
    zero_pad = jnp.zeros((C, Dp - (D + 1)), dtype=jnp.float32)
    sembs_aug = jnp.concatenate(
        [compact_sembs.astype(jnp.float32), ones_col, zero_pad], axis=1
    ).astype(jnp.bfloat16)                           # MXU-native, resident in VMEM

    TN, vmem_limit = _plan_tiles(N, C, D, Dp)
    grid = (_cdiv(N, TN),)                           # ragged last block is clipped

    kernel = functools.partial(
        _v2s_kernel, denom_col=D, out_d=D, bf16_exp=_bf16_exp_supported())

    out = pl.pallas_call(
        kernel,
        out_shape=jax.ShapeDtypeStruct((N, D), jnp.float32),
        grid=grid,
        in_specs=[
            pl.BlockSpec((TN, C), lambda i: (i, 0)),    # streamed logits tiles
            pl.BlockSpec((C, Dp), lambda i: (0, 0)),    # resident augmented sembs
        ],
        out_specs=pl.BlockSpec((TN, D), lambda i: (i, 0)),
        compiler_params=pltpu.CompilerParams(
            dimension_semantics=("parallel",),
            vmem_limit_bytes=vmem_limit),
        cost_estimate=pl.CostEstimate(
            flops=2 * N * C * Dp,
            transcendentals=N * C,
            bytes_accessed=4 * N * C + 2 * C * Dp + 4 * N * D),
    )(logits_raw.astype(jnp.float32), sembs_aug)
    return out


@functools.partial(jax.jit, static_argnames=("lengths", "maxT"))
def _forward_impl(logits_raw, compact_sembs, *, lengths, maxT):
    embs = _softmax_matmul(logits_raw, compact_sembs)          # [N, D] f32
    N, D = embs.shape
    B = len(lengths)
    Lmax = max(lengths)

    # pad_sequence (batch_first=False) via one fused gather: invalid slots use
    # an out-of-bounds index (N) so mode='fill' zero-fills them in the same op.
    # TODO(synk): a fully fused in-kernel scatter (scalar-prefetched (t,b)
    # destinations, data-dependent out index_map) would remove this extra pass.
    idx = np.full((Lmax, B), N, dtype=np.int32)
    off = 0
    for b, L in enumerate(lengths):
        idx[:L, b] = off + np.arange(L, dtype=np.int32)
        off += L
    sbatch = jnp.take(embs, jnp.asarray(idx.reshape(-1)), axis=0,
                      mode="fill", fill_value=0).reshape(Lmax, B, D)

    # length_to_mask: mask[i, j] = j < lengths[i]
    tlen = jnp.asarray(lengths, dtype=jnp.int32)
    masks = jnp.arange(maxT, dtype=jnp.int32)[None, :] < tlen[:, None]
    return sbatch, masks, tlen


def neko_v2s_basic_forward(logits_raw, lengths, compact_sembs, maxT):
    """JAX/Pallas equivalent of neko_v2s_basic.forward.

    logits_raw: [N, C] float32, N = sum(lengths)
    lengths:    python list of ints (static)
    compact_sembs: [C, D] float32
    maxT: int
    Returns (sbatch [max(lengths), B, D], masks [B, maxT] bool, tlen [B] int32).
    """
    lengths = tuple(int(l) for l in lengths)
    return _forward_impl(logits_raw, compact_sembs, lengths=lengths,
                         maxT=int(maxT))


if __name__ == "__main__":
    key = jax.random.PRNGKey(0)
    k1, k2 = jax.random.split(key)

    # Small synthetic shapes consistent with the module (N = 11 exercises the
    # ragged last-block path now that the jnp.pad was removed):
    lengths = [5, 4, 2]         # batch of 3 variable-length sequences
    N = sum(lengths)            # total tokens = 11
    C = 32                      # number of classes (softmax axis)
    D = 32                      # semantic embedding dim
    maxT = 8

    logits_raw = jax.random.normal(k1, (N, C), dtype=jnp.float32)
    compact_sembs = jax.random.normal(k2, (C, D), dtype=jnp.float32)

    sbatch, masks, tlen = neko_v2s_basic_forward(
        logits_raw, lengths, compact_sembs, maxT)
    jax.block_until_ready(sbatch)
    jax.block_until_ready(masks)
    jax.block_until_ready(tlen)

    # Reference in plain JAX (bf16 exp/MXU + approx reciprocal -> looser tol).
    prob_ref = jax.nn.softmax(logits_raw, axis=-1)
    embs_ref = prob_ref @ compact_sembs
    Lmax, B = max(lengths), len(lengths)
    sbatch_ref = jnp.zeros((Lmax, B, D), dtype=jnp.float32)
    off = 0
    for b, L in enumerate(lengths):
        sbatch_ref = sbatch_ref.at[:L, b, :].set(embs_ref[off:off + L])
        off += L
    max_err = float(jnp.max(jnp.abs(sbatch - sbatch_ref)))
    assert jnp.allclose(sbatch, sbatch_ref, atol=3e-2, rtol=3e-2), max_err
    assert sbatch.shape == (Lmax, B, D)
    assert masks.shape == (B, maxT)
    assert bool(masks[0, 4]) and not bool(masks[0, 5])
    assert bool(masks[1, 3]) and not bool(masks[1, 4])
    assert bool(masks[2, 1]) and not bool(masks[2, 2])
    assert int(tlen[0]) == 5 and int(tlen[1]) == 4 and int(tlen[2]) == 2

    print("KERNEL_OK")
</pallas_src>

<mosaic_0001>
module attributes {stable_mosaic.version = 11 : i64} {
  func.func @_v2s_kernel(%arg0: i32, %arg1: memref<16x32xf32, #tpu.memory_space<vmem>>, %arg2: memref<32x128xbf16, #tpu.memory_space<vmem>>, %arg3: memref<16x32xf32, #tpu.memory_space<vmem>>) attributes {dimension_semantics = [#tpu.dimension_semantics<parallel>], iteration_bounds = array<i64: 1>, scalar_prefetch = 0 : i64, scratch_operands = 0 : i64, tpu.core_type = #tpu.core_type<tc>, window_params = [{transform_indices = @transform_0, window_bounds = array<i64: 16, 32>}, {pipeline_mode = #tpu.pipeline_mode<synchronous>, transform_indices = @transform_1, window_bounds = array<i64: 32, 128>}, {transform_indices = @transform_2, window_bounds = array<i64: 16, 32>}]} {
    %c0 = arith.constant 0 : index
    %c0_0 = arith.constant 0 : index
    %0 = vector.load %arg1[%c0, %c0_0] : memref<16x32xf32, #tpu.memory_space<vmem>>, vector<16x32xf32>
    %cst = arith.constant dense<0xFF800000> : vector<16xf32>
    %1 = vector.multi_reduction <maximumf>, %0, %cst [1] : vector<16x32xf32> to vector<16xf32>
    %2 = vector.shape_cast %1 : vector<16xf32> to vector<16x1xf32>
    %3 = vector.broadcast %2 : vector<16x1xf32> to vector<16x32xf32>
    %4 = arith.subf %0, %3 : vector<16x32xf32>
    %5 = math.exp %4 : vector<16x32xf32>
    %6 = arith.truncf %5 : vector<16x32xf32> to vector<16x32xbf16>
    %c0_1 = arith.constant 0 : index
    %c0_2 = arith.constant 0 : index
    %7 = vector.load %arg2[%c0_1, %c0_2] : memref<32x128xbf16, #tpu.memory_space<vmem>>, vector<32x128xbf16>
    %cst_3 = arith.constant dense<0.000000e+00> : vector<16x128xf32>
    %8 = tpu.matmul %6, %7, %cst_3 {dimension_numbers = #tpu.dot_dimension_numbers<[1], [0], [0], [1], [0, 0, 1, 1], [], []>} : vector<16x32xbf16>, vector<32x128xbf16>, vector<16x128xf32> -> vector<16x128xf32>
    %9 = vector.extract_strided_slice %8 {offsets = [0, 32], sizes = [16, 1], strides = [1, 1]} : vector<16x128xf32> to vector<16x1xf32>
    %10 = tpu.reciprocal %9 {approx = true} : vector<16x1xf32> -> vector<16x1xf32>
    %11 = vector.extract_strided_slice %8 {offsets = [0, 0], sizes = [16, 32], strides = [1, 1]} : vector<16x128xf32> to vector<16x32xf32>
    %12 = vector.broadcast %10 : vector<16x1xf32> to vector<16x32xf32>
    %13 = arith.mulf %11, %12 : vector<16x32xf32>
    %c0_4 = arith.constant 0 : index
    %c0_5 = arith.constant 0 : index
    %14 = vector.load %arg3[%c0_4, %c0_5] : memref<16x32xf32, #tpu.memory_space<vmem>>, vector<16x32xf32>
    tpu.vector_store %arg3[%c0_4, %c0_5], %13 {strides = array<i32>} : memref<16x32xf32, #tpu.memory_space<vmem>>, vector<16x32xf32>,
    return
  }
  func.func @transform_0(%arg0: i32) -> (i32, i32) {
    %c0_i32 = arith.constant 0 : i32
    %c0_i32_0 = arith.constant 0 : i32
    return %arg0, %c0_i32 : i32, i32
  }
  func.func @transform_1(%arg0: i32) -> (i32, i32) {
    %c0_i32 = arith.constant 0 : i32
    %c0_i32_0 = arith.constant 0 : i32
    %c0_i32_1 = arith.constant 0 : i32
    return %c0_i32, %c0_i32_0 : i32, i32
  }
  func.func @transform_2(%arg0: i32) -> (i32, i32) {
    %c0_i32 = arith.constant 0 : i32
    %c0_i32_0 = arith.constant 0 : i32
    return %arg0, %c0_i32 : i32, i32
  }
}

</mosaic_0001>

<llo_original>
// kernel: _forward_impl.1
$region0: #{_forward_impl.1}
  #allocation0 [shape = 'u32[]', space=smem, size = 0x4, offset = 0x4, fixed_abs, tag = 'smem constant byte address 0x4 - core index']
  #allocation1 [shape = 'u32[144,128]{1,0:T(1,128)}', space=vmem, size = 0x12000, scoped, tag = 'internal scratch']
  %s0 = inlined_call_operand.vmem [shape: f32[11,32], index: 0, kind: input, shape index: {}]
  %s1 = inlined_call_operand.vmem [shape: bf16[32,128], index: 1, kind: input, shape index: {}]
  %s2 = inlined_call_operand.vmem [shape: f32[11,32], index: 2, kind: output, shape index: {}]
  %s3 = sld [smem:[#allocation0]]
  $region18: #{_forward_impl.1} parent=0
    _
  %s5 = ssub.s32 1, %s3
  %s6 = scalar_select 0, %s5, %s3
  // Predicated region
  $region2: #{_forward_impl.1} parent=0 // pred_check
    _
  $region3: #{_forward_impl.1} parent=0 // pred_check_branch
    %8 = sbr.rel (0) target = $region5
  $region4: #{_forward_impl.1} parent=0 // pred_region
    _
  $region5: #{_forward_impl.1} parent=0 // pred_fallthru
    _
  // Predicated region
  $region6: #{_forward_impl.1} parent=0 // pred_check
    _
  $region7: #{_forward_impl.1} parent=0 // pred_check_branch
    %10 = sbr.rel (0) target = $region9
  $region8: #{_forward_impl.1} parent=0 // pred_region
    _
  $region9: #{_forward_impl.1} parent=0 // pred_fallthru
    _
  %v12 = vld [vmem:[%s0] sm:$0xff]
  %v13 = vld [vmem:[%s0 + $0x8] sm:$0xff]
  %vm14 = vcmask 261120
  %v15 = vsel %vm14, %v12, -inf
  %16 = vmax.xlane.f32.xlu0 %v15
  %v17 = vpop.xlane.xlu0 %16
  %v18 = vsel %vm14, %v13, -inf
  %19 = vmax.xlane.f32.xlu0 %v18
  %v20 = vpop.xlane.xlu0 %19
  %v21 = vsub.f32 %v12, %v17
  %v22 = vsub.f32 %v13, %v20
  %v23 = vmul.f32 %v21, 1.442695
  %v24 = vpow.pop %v23
  %v25 = vmul.f32 %v22, 1.442695
  %v26 = vpow.pop %v25
  %v27 = vpack.c.bf16 %v26, %v24
  %v28 = vld [vmem:[%s1] sm:$0xf]
  %v29 = vld [vmem:[%s1 + $0x4] sm:$0xf]
  %v30 = vld [vmem:[%s1 + $0x8] sm:$0xf]
  %v31 = vld [vmem:[%s1 + $0xc] sm:$0xf]
  %v36 = vunpack.c.l.b16 %v28
  %v37 = vunpack.c.l.b16 %v29
  %v38 = vunpack.c.l.b16 %v30
  %v39 = vunpack.c.l.b16 %v31
  %v40 = vpack.c.b16 %v37, %v36
  %v41 = vpack.c.b16 %v39, %v38
  %v45 = vsel %vm14, %v27, 0
  %47 = vmatprep.subr.bf16.mxu0 0
  %48 = vmatpush1.bf16.msra.mxu0 %v40
  %49 = vmatprep.subr.bf16.mxu0 0
  %50 = vmatpush1.bf16.msra.mxu0 %v41
  %51 = vmatprep.subr.bf16.mxu0 0
  %52 = vmatpush1.bf16.msra.mxu0 0
  %53 = vmatprep.subr.bf16.mxu0 0
  %54 = vmatpush1.bf16.msra.mxu0 0
  %55 = vmatprep.subr.bf16.mxu0 0
  %56 = vmatpush1.bf16.msra.mxu0 0
  %57 = vmatprep.subr.bf16.mxu0 0
  %58 = vmatpush1.bf16.msra.mxu0 0
  %59 = vmatprep.subr.bf16.mxu0 0
  %60 = vmatpush1.bf16.msra.mxu0 0
  %61 = vmatprep.subr.bf16.mxu0 0
  %62 = vmatpush1.bf16.msra.mxu0 0
  %63 = vmatprep.subr.bf16.mxu0 0
  %64 = vmatpush1.bf16.msra.mxu0 0
  %65 = vmatprep.subr.bf16.mxu0 0
  %66 = vmatpush1.bf16.msra.mxu0 0
  %67 = vmatprep.subr.bf16.mxu0 0
  %68 = vmatpush1.bf16.msra.mxu0 0
  %69 = vmatprep.subr.bf16.mxu0 0
  %70 = vmatpush1.bf16.msra.mxu0 0
  %71 = vmatprep.subr.bf16.mxu0 0
  %72 = vmatpush1.bf16.msra.mxu0 0
  %73 = vmatprep.subr.bf16.mxu0 0
  %74 = vmatpush1.bf16.msra.mxu0 0
  %75 = vmatprep.subr.bf16.mxu0 0
  %76 = vmatpush1.bf16.msra.mxu0 0
  %77 = vmatprep.subr.bf16.mxu0 0
  %78 = vmatpush1.bf16.msra.mxu0 0
  %79 = vmatprep.mubr.bf16.mxu0 0
  %80 = vmatmul.mubr.bf16.gmra.mrb[0].mxu0 %v45
  %v81 = vpop.f32.mrb[0].mxu0
  %v82 = vadd.f32 0.0, %v81
  %v83 = vpop.f32.mrb[0].mxu0
  %v84 = vpop.f32.mrb[0].mxu0
  %v85 = vadd.f32 0.0, %v84
  %v86 = vpop.f32.mrb[0].mxu0
  %87 = vdwg.mxu0
  %v88 = vrcp.pop %v82
  %v89 = vrcp.pop %v85
  %91 = vset.pattern.permute.xlu0 32
  %92 = vperm.xlu0 %91, %v88
  %v93 = vpop.permute.xlu0 %92
  %96 = vset.pattern.permute.xlu0 32
  %97 = vperm.xlu0 %96, %v89
  %v98 = vpop.permute.xlu0 %97
  %v100 = vmul.f32 %v82, %v93
  %v101 = vmul.f32 %v85, %v98
  %102 = vst.msk [vmem:[%s2] sm:$0xff] %vm14, %v100
  %103 = vst.msk [vmem:[%s2 + $0x8] sm:$0xff] %vm14, %v101
  // Predicated region
  $region10: #{_forward_impl.1} parent=0 // pred_check
    _
  $region11: #{_forward_impl.1} parent=0 // pred_check_branch
    %105 = sbr.rel (0) target = $region13
  $region12: #{_forward_impl.1} parent=0 // pred_region
    _
  $region13: #{_forward_impl.1} parent=0 // pred_fallthru
    _
  // Predicated region
  $region14: #{_forward_impl.1} parent=0 // pred_check
    _
  $region15: #{_forward_impl.1} parent=0 // pred_check_branch
    %107 = sbr.rel (0) target = $region17
  $region16: #{_forward_impl.1} parent=0 // pred_region
    _
  $region17: #{_forward_impl.1} parent=0 // pred_fallthru
    _

</llo_original>
